<compile_context>
chip_gen: v5e
topology: v5e:2x2
jax: 0.10.0
libtpu: 0.0.40
codegen_flags: <defaults>
</compile_context>

<pallas_src>
import functools
import math

import jax
import jax.numpy as jnp
from jax.experimental import pallas as pl
from jax.experimental.pallas import tpu as pltpu


def _ce_kernel(logits_ref, labels_ref, loss_ref, *, ignore_lb, num_classes):
    """Per-tile numerically-stable cross entropy with ignore_index masking.

    logits_ref: (C, TH, W) f32   labels_ref: (TH, W) i32   loss_ref: (TH, W) f32
    """
    lab = labels_ref[...]                                   # (TH, W) int32

    # max over the (leading) class axis -- unrolled per-lane VPU ops.
    m = logits_ref[0]
    for c in range(1, num_classes):
        m = jnp.maximum(m, logits_ref[c])

    # fused exp-sum + gather of x[label] (no materialized one-hot).
    s = jnp.zeros_like(m)
    picked = jnp.zeros_like(m)
    for c in range(num_classes):
        xc = logits_ref[c]
        s = s + jnp.exp(xc - m)
        picked = picked + jnp.where(lab == c, xc, 0.0)

    lse = jnp.log(s) + m                                    # logsumexp(x)
    valid = lab != ignore_lb
    # matches nn.CrossEntropyLoss(ignore_index=..., reduction='none'): 0 at ignored.
    loss_ref[...] = jnp.where(valid, lse - picked, 0.0).astype(loss_ref.dtype)


def selected_loss(logits, labels, *, thresh=0.7, ignore_lb=255):
    """Forward pass of SelectedLoss (y=None path, i.e. unweighted CE).

    logits: (N, C, H, W) float   labels: (N, H, W) int
    Returns a scalar float32 matching SelectedLoss(thresh).forward(logits, labels).
    """
    N, C, H, W = logits.shape
    P = N * H * W
    thresh_val = float(-math.log(thresh))

    logits = logits.astype(jnp.float32)
    labels_i = labels.astype(jnp.int32)

    # ---- tile sizing: lane-dense (TH, W) pixel tiles, logits block <= ~4 MiB
    # so double-buffered inputs + f32 intermediates stay well inside the scoped
    # VMEM default on every generation (v5e 16 MiB ... v7x 32 MiB of 64 MiB).
    pix_budget = (4 * 1024 * 1024) // max(4 * C, 1)
    pix_target = int(min(32768, max(1024, pix_budget)))
    TH = max(1, pix_target // W)
    if TH >= H:
        TH = H                       # full height: last-two block dims == array dims
    else:
        TH = max(8, (TH // 8) * 8)   # sublane-aligned; partial last block is masked

    grid = (N, pl.cdiv(H, TH))

    kernel = functools.partial(_ce_kernel, ignore_lb=ignore_lb, num_classes=C)

    loss_map = pl.pallas_call(
        kernel,
        out_shape=jax.ShapeDtypeStruct((N, H, W), jnp.float32),
        grid_spec=pltpu.PrefetchScalarGridSpec(
            num_scalar_prefetch=0,
            grid=grid,
            in_specs=[
                # logits: (1, C, TH, W) block, batch dim squeezed away.
                pl.BlockSpec((None, C, TH, W), lambda n, hi: (n, 0, hi, 0)),
                # labels: (1, TH, W) block, lane-dense.
                pl.BlockSpec((None, TH, W), lambda n, hi: (n, hi, 0)),
            ],
            out_specs=pl.BlockSpec((None, TH, W), lambda n, hi: (n, hi, 0)),
        ),
        compiler_params=pltpu.CompilerParams(
            dimension_semantics=("parallel", "parallel")),
    )(logits, labels_i)

    # ---- selection / reduction glue (plain JAX, fuses with the loss map) ----
    loss = loss_map.reshape(-1)                                 # (P,) per-pixel CE
    valid = labels_i.reshape(-1) != ignore_lb

    n_valid = jnp.sum(valid.astype(jnp.int32))
    n_min = n_valid // 16                                       # labels[!=ignore].numel() // 16

    hard = loss > thresh_val
    n_hard = jnp.sum(hard.astype(jnp.int32))
    sum_hard = jnp.sum(jnp.where(hard, loss, 0.0))

    k_max = max(P // 16, 1)

    def _mean_topk(_):
        # fallback: mean of top-k(n_min) over the full loss vector (zeros at
        # ignored positions included, exactly like torch).  Static k = P // 16.
        topv, _ = jax.lax.top_k(loss, k_max)                    # descending
        rank = jnp.arange(k_max, dtype=jnp.int32)
        topk_sum = jnp.sum(jnp.where(rank < n_min, topv, 0.0))
        return topk_sum / jnp.maximum(n_min.astype(jnp.float32), 1.0)

    def _mean_hard(_):
        return sum_hard / jnp.maximum(n_hard.astype(jnp.float32), 1.0)

    # Only runs the (expensive) top_k branch when it is actually selected.
    result = jax.lax.cond(n_hard < n_min, _mean_topk, _mean_hard, operand=None)
    # degenerate case (no valid pixels at all): torch.mean(empty) == NaN.
    result = jnp.where((n_hard == 0) & (n_min == 0), jnp.nan, result)
    return result


def _selected_loss_ref(logits, labels, *, thresh=0.7, ignore_lb=255):
    """Pure-JAX reference for correctness checking."""
    N, C, H, W = logits.shape
    x = jnp.transpose(logits, (0, 2, 3, 1)).reshape(-1, C).astype(jnp.float32)
    lab = labels.reshape(-1).astype(jnp.int32)
    logp = jax.nn.log_softmax(x, axis=-1)
    picked = jnp.take_along_axis(logp, jnp.clip(lab, 0, C - 1)[:, None], axis=-1)[:, 0]
    valid = lab != ignore_lb
    loss = jnp.where(valid, -picked, 0.0)
    th = -math.log(thresh)
    n_min = jnp.sum(valid.astype(jnp.int32)) // 16
    hard = loss > th
    n_hard = jnp.sum(hard.astype(jnp.int32))
    mean_hard = jnp.sum(jnp.where(hard, loss, 0.0)) / jnp.maximum(n_hard, 1).astype(jnp.float32)
    sorted_desc = jnp.sort(loss)[::-1]
    topk_sum = jnp.sum(jnp.where(jnp.arange(loss.shape[0]) < n_min, sorted_desc, 0.0))
    mean_topk = topk_sum / jnp.maximum(n_min, 1).astype(jnp.float32)
    return jnp.where(n_hard < n_min, mean_topk, mean_hard)


if __name__ == "__main__":
    key = jax.random.PRNGKey(0)
    k1, k2 = jax.random.split(key)

    N, C, H, W = 2, 4, 16, 16
    logits = jax.random.normal(k1, (N, C, H, W), dtype=jnp.float32)
    labels = jax.random.randint(k2, (N, H, W), 0, C).astype(jnp.int32)
    # sprinkle some ignored pixels (ignore_lb = 255)
    labels = labels.at[0, 0, :4].set(255)

    out = selected_loss(logits, labels, thresh=0.7, ignore_lb=255)
    jax.block_until_ready(out)
    assert out.shape == () and bool(jnp.isfinite(out))

    ref = _selected_loss_ref(logits, labels, thresh=0.7, ignore_lb=255)
    assert bool(jnp.allclose(out, ref, rtol=1e-5, atol=1e-5)), (out, ref)

    print("KERNEL_OK")
</pallas_src>

<mosaic_0001>
module attributes {stable_mosaic.version = 11 : i64} {
  func.func @_ce_kernel(%arg0: i32, %arg1: i32, %arg2: memref<1x4x16x16xf32, #tpu.memory_space<vmem>>, %arg3: memref<1x16x16xi32, #tpu.memory_space<vmem>>, %arg4: memref<1x16x16xf32, #tpu.memory_space<vmem>>) attributes {dimension_semantics = [#tpu.dimension_semantics<parallel>, #tpu.dimension_semantics<parallel>], iteration_bounds = array<i64: 2, 1>, scalar_prefetch = 0 : i64, scratch_operands = 0 : i64, tpu.core_type = #tpu.core_type<tc>, window_params = [{transform_indices = @transform_0, window_bounds = array<i64: 1, 4, 16, 16>}, {transform_indices = @transform_1, window_bounds = array<i64: 1, 16, 16>}, {transform_indices = @transform_2, window_bounds = array<i64: 1, 16, 16>}]} {
    %c0 = arith.constant 0 : index
    %c0_0 = arith.constant 0 : index
    %c0_1 = arith.constant 0 : index
    %0 = vector.load %arg3[%c0, %c0_0, %c0_1] : memref<1x16x16xi32, #tpu.memory_space<vmem>>, vector<1x16x16xi32>
    %1 = vector.shape_cast %0 : vector<1x16x16xi32> to vector<16x16xi32>
    %c0_2 = arith.constant 0 : index
    %c0_3 = arith.constant 0 : index
    %c0_4 = arith.constant 0 : index
    %c0_5 = arith.constant 0 : index
    %2 = vector.load %arg2[%c0_2, %c0_3, %c0_4, %c0_5] : memref<1x4x16x16xf32, #tpu.memory_space<vmem>>, vector<1x1x16x16xf32>
    %3 = vector.shape_cast %2 : vector<1x1x16x16xf32> to vector<16x16xf32>
    %c0_6 = arith.constant 0 : index
    %c1 = arith.constant 1 : index
    %c0_7 = arith.constant 0 : index
    %c0_8 = arith.constant 0 : index
    %4 = vector.load %arg2[%c0_6, %c1, %c0_7, %c0_8] : memref<1x4x16x16xf32, #tpu.memory_space<vmem>>, vector<1x1x16x16xf32>
    %5 = vector.shape_cast %4 : vector<1x1x16x16xf32> to vector<16x16xf32>
    %6 = arith.maximumf %3, %5 : vector<16x16xf32>
    %c0_9 = arith.constant 0 : index
    %c2 = arith.constant 2 : index
    %c0_10 = arith.constant 0 : index
    %c0_11 = arith.constant 0 : index
    %7 = vector.load %arg2[%c0_9, %c2, %c0_10, %c0_11] : memref<1x4x16x16xf32, #tpu.memory_space<vmem>>, vector<1x1x16x16xf32>
    %8 = vector.shape_cast %7 : vector<1x1x16x16xf32> to vector<16x16xf32>
    %9 = arith.maximumf %6, %8 : vector<16x16xf32>
    %c0_12 = arith.constant 0 : index
    %c3 = arith.constant 3 : index
    %c0_13 = arith.constant 0 : index
    %c0_14 = arith.constant 0 : index
    %10 = vector.load %arg2[%c0_12, %c3, %c0_13, %c0_14] : memref<1x4x16x16xf32, #tpu.memory_space<vmem>>, vector<1x1x16x16xf32>
    %11 = vector.shape_cast %10 : vector<1x1x16x16xf32> to vector<16x16xf32>
    %12 = arith.maximumf %9, %11 : vector<16x16xf32>
    %cst = arith.constant 0.000000e+00 : f32
    %13 = vector.broadcast %cst : f32 to vector<16x16xf32>
    %cst_15 = arith.constant 0.000000e+00 : f32
    %14 = vector.broadcast %cst_15 : f32 to vector<16x16xf32>
    %c0_16 = arith.constant 0 : index
    %c0_17 = arith.constant 0 : index
    %c0_18 = arith.constant 0 : index
    %c0_19 = arith.constant 0 : index
    %15 = vector.load %arg2[%c0_16, %c0_17, %c0_18, %c0_19] : memref<1x4x16x16xf32, #tpu.memory_space<vmem>>, vector<1x1x16x16xf32>
    %16 = vector.shape_cast %15 : vector<1x1x16x16xf32> to vector<16x16xf32>
    %17 = arith.subf %16, %12 : vector<16x16xf32>
    %18 = math.exp %17 : vector<16x16xf32>
    %19 = arith.addf %13, %18 : vector<16x16xf32>
    %c0_i32 = arith.constant 0 : i32
    %20 = vector.broadcast %c0_i32 : i32 to vector<16x16xi32>
    %21 = arith.cmpi eq, %1, %20 : vector<16x16xi32>
    %cst_20 = arith.constant 0.000000e+00 : f32
    %22 = vector.broadcast %cst_20 : f32 to vector<16x16xf32>
    %23 = arith.select %21, %16, %22 : vector<16x16xi1>, vector<16x16xf32>
    %24 = arith.addf %14, %23 : vector<16x16xf32>
    %c0_21 = arith.constant 0 : index
    %c1_22 = arith.constant 1 : index
    %c0_23 = arith.constant 0 : index
    %c0_24 = arith.constant 0 : index
    %25 = vector.load %arg2[%c0_21, %c1_22, %c0_23, %c0_24] : memref<1x4x16x16xf32, #tpu.memory_space<vmem>>, vector<1x1x16x16xf32>
    %26 = vector.shape_cast %25 : vector<1x1x16x16xf32> to vector<16x16xf32>
    %27 = arith.subf %26, %12 : vector<16x16xf32>
    %28 = math.exp %27 : vector<16x16xf32>
    %29 = arith.addf %19, %28 : vector<16x16xf32>
    %c1_i32 = arith.constant 1 : i32
    %30 = vector.broadcast %c1_i32 : i32 to vector<16x16xi32>
    %31 = arith.cmpi eq, %1, %30 : vector<16x16xi32>
    %cst_25 = arith.constant 0.000000e+00 : f32
    %32 = vector.broadcast %cst_25 : f32 to vector<16x16xf32>
    %33 = arith.select %31, %26, %32 : vector<16x16xi1>, vector<16x16xf32>
    %34 = arith.addf %24, %33 : vector<16x16xf32>
    %c0_26 = arith.constant 0 : index
    %c2_27 = arith.constant 2 : index
    %c0_28 = arith.constant 0 : index
    %c0_29 = arith.constant 0 : index
    %35 = vector.load %arg2[%c0_26, %c2_27, %c0_28, %c0_29] : memref<1x4x16x16xf32, #tpu.memory_space<vmem>>, vector<1x1x16x16xf32>
    %36 = vector.shape_cast %35 : vector<1x1x16x16xf32> to vector<16x16xf32>
    %37 = arith.subf %36, %12 : vector<16x16xf32>
    %38 = math.exp %37 : vector<16x16xf32>
    %39 = arith.addf %29, %38 : vector<16x16xf32>
    %c2_i32 = arith.constant 2 : i32
    %40 = vector.broadcast %c2_i32 : i32 to vector<16x16xi32>
    %41 = arith.cmpi eq, %1, %40 : vector<16x16xi32>
    %cst_30 = arith.constant 0.000000e+00 : f32
    %42 = vector.broadcast %cst_30 : f32 to vector<16x16xf32>
    %43 = arith.select %41, %36, %42 : vector<16x16xi1>, vector<16x16xf32>
    %44 = arith.addf %34, %43 : vector<16x16xf32>
    %c0_31 = arith.constant 0 : index
    %c3_32 = arith.constant 3 : index
    %c0_33 = arith.constant 0 : index
    %c0_34 = arith.constant 0 : index
    %45 = vector.load %arg2[%c0_31, %c3_32, %c0_33, %c0_34] : memref<1x4x16x16xf32, #tpu.memory_space<vmem>>, vector<1x1x16x16xf32>
    %46 = vector.shape_cast %45 : vector<1x1x16x16xf32> to vector<16x16xf32>
    %47 = arith.subf %46, %12 : vector<16x16xf32>
    %48 = math.exp %47 : vector<16x16xf32>
    %49 = arith.addf %39, %48 : vector<16x16xf32>
    %c3_i32 = arith.constant 3 : i32
    %50 = vector.broadcast %c3_i32 : i32 to vector<16x16xi32>
    %51 = arith.cmpi eq, %1, %50 : vector<16x16xi32>
    %cst_35 = arith.constant 0.000000e+00 : f32
    %52 = vector.broadcast %cst_35 : f32 to vector<16x16xf32>
    %53 = arith.select %51, %46, %52 : vector<16x16xi1>, vector<16x16xf32>
    %54 = arith.addf %44, %53 : vector<16x16xf32>
    %55 = math.log %49 : vector<16x16xf32>
    %56 = arith.addf %55, %12 : vector<16x16xf32>
    %c255_i32 = arith.constant 255 : i32
    %57 = vector.broadcast %c255_i32 : i32 to vector<16x16xi32>
    %58 = arith.cmpi ne, %1, %57 : vector<16x16xi32>
    %59 = arith.subf %56, %54 : vector<16x16xf32>
    %cst_36 = arith.constant 0.000000e+00 : f32
    %60 = vector.broadcast %cst_36 : f32 to vector<16x16xf32>
    %61 = arith.select %58, %59, %60 : vector<16x16xi1>, vector<16x16xf32>
    %c0_37 = arith.constant 0 : index
    %c0_38 = arith.constant 0 : index
    %c0_39 = arith.constant 0 : index
    %62 = vector.load %arg4[%c0_37, %c0_38, %c0_39] : memref<1x16x16xf32, #tpu.memory_space<vmem>>, vector<1x16x16xf32>
    %63 = vector.shape_cast %62 : vector<1x16x16xf32> to vector<16x16xf32>
    %64 = vector.shape_cast %61 : vector<16x16xf32> to vector<1x16x16xf32>
    tpu.vector_store %arg4[%c0_37, %c0_38, %c0_39], %64 {strides = array<i32>} : memref<1x16x16xf32, #tpu.memory_space<vmem>>, vector<1x16x16xf32>,
    return
  }
  func.func @transform_0(%arg0: i32, %arg1: i32) -> (i32, i32, i32, i32) {
    %c0_i32 = arith.constant 0 : i32
    %c0_i32_0 = arith.constant 0 : i32
    %c0_i32_1 = arith.constant 0 : i32
    return %arg0, %c0_i32, %arg1, %c0_i32_0 : i32, i32, i32, i32
  }
  func.func @transform_1(%arg0: i32, %arg1: i32) -> (i32, i32, i32) {
    %c0_i32 = arith.constant 0 : i32
    %c0_i32_0 = arith.constant 0 : i32
    return %arg0, %arg1, %c0_i32 : i32, i32, i32
  }
  func.func @transform_2(%arg0: i32, %arg1: i32) -> (i32, i32, i32) {
    %c0_i32 = arith.constant 0 : i32
    %c0_i32_0 = arith.constant 0 : i32
    return %arg0, %arg1, %c0_i32 : i32, i32, i32
  }
}

</mosaic_0001>

<llo_original>
// kernel: tpu_custom_call.1
$region0: #{tpu_custom_call.1}
  #allocation0 [shape = 'u32[]', space=smem, size = 0x4, offset = 0x4, fixed_abs, tag = 'smem constant byte address 0x4 - core index']
  #allocation1 [shape = 'u32[72,128]{1,0:T(1,128)}', space=vmem, size = 0x9000, scoped, tag = 'internal scratch']
  %s0 = inlined_call_operand.hbm [shape: f32[2,4,16,16], index: 0, kind: input, shape index: {}]
  %s1 = inlined_call_operand.hbm [shape: s32[2,16,16], index: 1, kind: input, shape index: {}]
  %s2 = inlined_call_operand.hbm [shape: f32[2,16,16], index: 2, kind: output, shape index: {}]
  %s3 = sld [smem:[#allocation0]]
  $region49: #{tpu_custom_call.1} parent=0
    _
  %s5 = ssub.s32 1, %s3
  %s6 = scalar_select 0, %s5, %s3
  $region1: #{tpu_custom_call.1} parent=0
    #allocation2 [shape = 'u8[65536]{0}', space=vmem, size = 0x10000, scoped, tag = 'input window, operand 0']
    #allocation3 [shape = 's32[2]{0}', space=sflag, size = 0x8, scoped, tag = 'scoped memory for tpu_custom_call.1']
    #allocation4 [shape = 's32[2]{0}', space=sflag, size = 0x8, scoped, tag = 'scoped memory for tpu_custom_call.1']
    #allocation5 [shape = 'u8[16384]{0}', space=vmem, size = 0x4000, scoped, tag = 'input window, operand 1']
    #allocation6 [shape = 's32[2]{0}', space=sflag, size = 0x8, scoped, tag = 'scoped memory for tpu_custom_call.1']
    #allocation7 [shape = 'u8[16384]{0}', space=vmem, size = 0x4000, scoped, tag = 'output window, operand 0']
    %7 = vsyncpa [#allocation3], 0
    %s8 = scalar_lea.sflag [#allocation3], 1
    %9 = vsyncpa %s8, 0
    %10 = vsyncpa [#allocation6], 0
    %s11 = scalar_lea.sflag [#allocation6], 1
    %12 = vsyncpa %s11, 0
    %13 = vsyncpa [#allocation4], 0
    %s14 = scalar_lea.sflag [#allocation4], 1
    %15 = vsyncpa %s14, 0
    loop: start=0, step=1, limit=4
    $region2: #{tpu_custom_call.1} parent=1 // loop_pre_header
      _
    $region3: #{tpu_custom_call.1} parent=1 // loop_header
      %s17 = sphi 0, %s21
      %p18 = scmp.ge.s32.totalorder %s17, 4
      %s24 = sphi 0, %s36
      %s25 = sphi 0, %s32
      %s26 = sphi 0, %s24
      %s27 = sphi 0, %s25
      %s28 = sphi 0, %s26
      %s29 = sphi 0, %s27
      %s41 = sphi 0, %s43
      %s44 = sphi 0, %s41
      %s45 = sphi 0, %s44
      %s61 = sphi 0, %s45
      %s69 = sphi 0, %s71
      %s72 = sphi 0, %s69
      %s73 = sphi 0, %s72
      %s89 = sphi 0, %s73
      %s97 = sphi 0, %s99
      %s100 = sphi 0, %s97
      %s101 = sphi 0, %s100
      %s117 = sphi 0, %s101
    $region4: #{tpu_custom_call.1} parent=1 // loop_header_branch
      %20 = sbr.rel (%p18) target = $region8
    $region5: #{tpu_custom_call.1} parent=1 // loop_body
      %s22 = ssub.s32 %s17, 1
      %s23 = ssub.s32 %s17, 2
      %s30 = sadd.s32 1, %s25
      %p31 = scmp.ge.s32.totalorder %s30, 1
      %s32 = scalar_select %p31, 0, %s30
      %s33 = sadd.s32 1, %s24
      %s34 = scalar_select %p31, %s33, %s24
      %p35 = scmp.ge.s32.totalorder %s34, 2
      %s36 = scalar_select %p35, 0, %s34
      %s37 = ssub.s32 %s24, %s36
      %s38 = ssub.s32 %s25, %s32
      %s39 = sor.u32 %s37, %s38
      %p40 = scmp.eq.s32.totalorder %s39, 0
      %s42 = sadd.s32 %s41, 1
      %s43 = scalar_select %p40, %s41, %s42
      %p46 = pneg %p40
      %p47 = scmp.eq.s32.totalorder %s17, 1
      %p48 = por %p46, %p47
      %p49 = scmp.ne.s32.totalorder %s41, %s44
      %p50 = scmp.eq.s32.totalorder %s17, 0
      %p51 = por %p49, %p50
      %p52 = scmp.ne.s32.totalorder %s41, %s44
      %p53 = scmp.eq.s32.totalorder %s22, 1
      %p54 = por %p52, %p53
      %p55 = scmp.ne.s32.totalorder %s44, %s45
      %p56 = scmp.eq.s32.totalorder %s22, 0
      %p57 = por %p55, %p56
      %p58 = scmp.ne.s32.totalorder %s44, %s45
      %p59 = scmp.eq.s32.totalorder %s23, 1
      %p60 = por %p58, %p59
      %p62 = scmp.ne.s32.totalorder %s45, %s61
      %p63 = scmp.eq.s32.totalorder %s23, 0
      %p64 = por %p62, %p63
      %s65 = ssub.s32 %s24, %s36
      %s66 = ssub.s32 %s25, %s32
      %s67 = sor.u32 %s65, %s66
      %p68 = scmp.eq.s32.totalorder %s67, 0
      %s70 = sadd.s32 %s69, 1
      %s71 = scalar_select %p68, %s69, %s70
      %p74 = pneg %p68
      %p75 = scmp.eq.s32.totalorder %s17, 1
      %p76 = por %p74, %p75
      %p77 = scmp.ne.s32.totalorder %s69, %s72
      %p78 = scmp.eq.s32.totalorder %s17, 0
      %p79 = por %p77, %p78
      %p80 = scmp.ne.s32.totalorder %s69, %s72
      %p81 = scmp.eq.s32.totalorder %s22, 1
      %p82 = por %p80, %p81
      %p83 = scmp.ne.s32.totalorder %s72, %s73
      %p84 = scmp.eq.s32.totalorder %s22, 0
      %p85 = por %p83, %p84
      %p86 = scmp.ne.s32.totalorder %s72, %s73
      %p87 = scmp.eq.s32.totalorder %s23, 1
      %p88 = por %p86, %p87
      %p90 = scmp.ne.s32.totalorder %s73, %s89
      %p91 = scmp.eq.s32.totalorder %s23, 0
      %p92 = por %p90, %p91
      %s93 = ssub.s32 %s24, %s36
      %s94 = ssub.s32 %s25, %s32
      %s95 = sor.u32 %s93, %s94
      %p96 = scmp.eq.s32.totalorder %s95, 0
      %s98 = sadd.s32 %s97, 1
      %s99 = scalar_select %p96, %s97, %s98
      %p102 = pneg %p96
      %p103 = scmp.eq.s32.totalorder %s17, 1
      %p104 = por %p102, %p103
      %p105 = scmp.ne.s32.totalorder %s97, %s100
      %p106 = scmp.eq.s32.totalorder %s17, 0
      %p107 = por %p105, %p106
      %p108 = scmp.ne.s32.totalorder %s97, %s100
      %p109 = scmp.eq.s32.totalorder %s22, 1
      %p110 = por %p108, %p109
      %p111 = scmp.ne.s32.totalorder %s100, %s101
      %p112 = scmp.eq.s32.totalorder %s22, 0
      %p113 = por %p111, %p112
      %p114 = scmp.ne.s32.totalorder %s100, %s101
      %p115 = scmp.eq.s32.totalorder %s23, 1
      %p116 = por %p114, %p115
      %p118 = scmp.ne.s32.totalorder %s101, %s117
      %p119 = scmp.eq.s32.totalorder %s23, 0
      %p120 = por %p118, %p119
      %p121 = scmp.le.s32.totalorder 1, %s17
      %p122 = scmp.lt.s32.totalorder %s17, 3
      %p123 = pnand %p121, %p122
      %p124 = pneg %p123
      // Predicated region
      $region9: #{tpu_custom_call.1} parent=5 // pred_check
        _
      $region10: #{tpu_custom_call.1} parent=5 // pred_check_branch
        %126 = sbr.rel (%p123) target = $region12
      $region11: #{tpu_custom_call.1} parent=5 // pred_region
        %s127 = ssub.s32 %s17, 1
      $region12: #{tpu_custom_call.1} parent=5 // pred_fallthru
        _
      %p128 = scmp.lt.s32.totalorder %s17, 2
      // Predicated region
      $region13: #{tpu_custom_call.1} parent=5 // pred_check
        %p129 = pneg %p128
      $region14: #{tpu_custom_call.1} parent=5 // pred_check_branch
        %131 = sbr.rel (%p129) target = $region16
      $region15: #{tpu_custom_call.1} parent=5 // pred_region
        // Predicated region
        $region17: #{tpu_custom_call.1} parent=15 // pred_check
          %p132 = pneg %p51
        $region18: #{tpu_custom_call.1} parent=15 // pred_check_branch
          %134 = sbr.rel (%p132) target = $region20
        $region19: #{tpu_custom_call.1} parent=15 // pred_region
          %s135 = sand.u32 %s41, 1
          %s136 = scalar_lea.sflag [#allocation3], %s135
          %s137 = sand.u32 %s41, 1
          %s138 = smul.addr %s137, 64
          %s139 = scalar_lea.vmem [#allocation2], %s138
          %s140 = smul.u32 2, %s25
          %142 = vsyncadd %s136, 0
          %s143 = smul.addr %s24, 8
          %s144 = sadd.s32 %s140, %s143
          %s145 = smul.addr %s144, 8
          %s146 = scalar_lea.hbm %s0, %s145
          %s147 = sshll.u32 %s146, 4
          %s148 = int_to_ptr.hbm [resolvable:$true] %s147
          %s149 = sshll.u32 %s139, 4
          %s150 = int_to_ptr.vmem [resolvable:$true] %s149
          %155 = dma.hbm_to_vmem [thread:$0]  %s148, 1024, %s150, %s136, 128, 128, 8
        $region20: #{tpu_custom_call.1} parent=15 // pred_fallthru
          _
        // Predicated region
        $region21: #{tpu_custom_call.1} parent=15 // pred_check
          %p156 = pneg %p79
        $region22: #{tpu_custom_call.1} parent=15 // pred_check_branch
          %158 = sbr.rel (%p156) target = $region24
        $region23: #{tpu_custom_call.1} parent=15 // pred_region
          %s159 = sand.u32 %s69, 1
          %s160 = scalar_lea.sflag [#allocation6], %s159
          %s161 = sand.u32 %s69, 1
          %s162 = smul.addr %s161, 16
          %s163 = scalar_lea.vmem [#allocation5], %s162
          %s164 = smul.u32 2, %s25
          %166 = vsyncadd %s160, 0
          %s167 = smul.addr %s24, 2
          %s168 = sadd.s32 %s164, %s167
          %s169 = smul.addr %s168, 8
          %s170 = scalar_lea.hbm %s1, %s169
          %s171 = sshll.u32 %s170, 4
          %s172 = int_to_ptr.hbm [resolvable:$true] %s171
          %s173 = sshll.u32 %s163, 4
          %s174 = int_to_ptr.vmem [resolvable:$true] %s173
          %179 = dma.hbm_to_vmem [thread:$0]  %s172, 256, %s174, %s160, 128, 128, 8
        $region24: #{tpu_custom_call.1} parent=15 // pred_fallthru
          _
      $region16: #{tpu_custom_call.1} parent=5 // pred_fallthru
        _
      %p180 = scmp.le.s32.totalorder 1, %s17
      %p181 = scmp.lt.s32.totalorder %s17, 3
      %p182 = pnand %p180, %p181
      %p183 = pneg %p182
      // Predicated region
      $region25: #{tpu_custom_call.1} parent=5 // pred_check
        _
      $region26: #{tpu_custom_call.1} parent=5 // pred_check_branch
        %185 = sbr.rel (%p182) target = $region28
      $region27: #{tpu_custom_call.1} parent=5 // pred_region
        %s186 = ssub.s32 %s17, 1
        %s187 = sand.u32 %s44, 1
        %s188 = scalar_lea.sflag [#allocation3], %s187
        %s189 = sand.u32 %s44, 1
        %s190 = smul.addr %s189, 64
        %s191 = scalar_lea.vmem [#allocation2], %s190
        // Predicated region
        $region29: #{tpu_custom_call.1} parent=27 // pred_check
          %p192 = pneg %p57
        $region30: #{tpu_custom_call.1} parent=27 // pred_check_branch
          %194 = sbr.rel (%p192) target = $region32
        $region31: #{tpu_custom_call.1} parent=27 // pred_region
          %196 = dma.done %s188, 1024
        $region32: #{tpu_custom_call.1} parent=27 // pred_fallthru
          _
        %s197 = sand.u32 %s72, 1
        %s198 = scalar_lea.sflag [#allocation6], %s197
        %s199 = sand.u32 %s72, 1
        %s200 = smul.addr %s199, 16
        %s201 = scalar_lea.vmem [#allocation5], %s200
        // Predicated region
        $region33: #{tpu_custom_call.1} parent=27 // pred_check
          %p202 = pneg %p85
        $region34: #{tpu_custom_call.1} parent=27 // pred_check_branch
          %204 = sbr.rel (%p202) target = $region36
        $region35: #{tpu_custom_call.1} parent=27 // pred_region
          %206 = dma.done %s198, 256
        $region36: #{tpu_custom_call.1} parent=27 // pred_fallthru
          _
        %s207 = sand.u32 %s44, 1
        %s208 = scalar_lea.sflag [#allocation3], %s207
        %s209 = sand.u32 %s44, 1
        %s210 = smul.addr %s209, 64
        %s211 = scalar_lea.vmem [#allocation2], %s210
        %p212 = pneg %p57
        %p213 = pneg %p54
        %s214 = sand.u32 %s72, 1
        %s215 = scalar_lea.sflag [#allocation6], %s214
        %s216 = sand.u32 %s72, 1
        %s217 = smul.addr %s216, 16
        %s218 = scalar_lea.vmem [#allocation5], %s217
        %p219 = pneg %p85
        %p220 = pneg %p82
        %p221 = pneg %p113
        %p222 = pneg %p110
        %s223 = sand.u32 %s100, 1
        %s224 = scalar_lea.sflag [#allocation4], %s223
        %s225 = sand.u32 %s100, 1
        %s226 = smul.addr %s225, 16
        %s227 = scalar_lea.vmem [#allocation7], %s226
        %s228 = smul.u32 2, %s27
        %s229 = smul.u32 2, %s27
        %s230 = smul.u32 2, %s27
        %v231 = vld [vmem:[%s201] sm:$0xff]
        %v232 = vld [vmem:[%s201 + $0x8] sm:$0xff]
        %v233 = vld [vmem:[%s191] sm:$0xff]
        %v234 = vld [vmem:[%s191 + $0x8] sm:$0xff]
        %s235 = scalar_lea.vmem %s191, 16 [#allocation2]
        %v236 = vld [vmem:[%s235] sm:$0xff]
        %v237 = vld [vmem:[%s235 + $0x8] sm:$0xff]
        %v238 = vmax.f32 %v233, %v236
        %v239 = vmax.f32 %v234, %v237
        %s240 = scalar_lea.vmem %s191, 32 [#allocation2]
        %v241 = vld [vmem:[%s240] sm:$0xff]
        %v242 = vld [vmem:[%s240 + $0x8] sm:$0xff]
        %v243 = vmax.f32 %v238, %v241
        %v244 = vmax.f32 %v239, %v242
        %s245 = scalar_lea.vmem %s191, 48 [#allocation2]
        %v246 = vld [vmem:[%s245] sm:$0xff]
        %v247 = vld [vmem:[%s245 + $0x8] sm:$0xff]
        %v248 = vmax.f32 %v243, %v246
        %v249 = vmax.f32 %v244, %v247
        %v250 = vsub.f32 %v233, %v248
        %v251 = vsub.f32 %v234, %v249
        %v252 = vmul.f32 %v250, 1.442695
        %v253 = vpow.pop %v252
        %v254 = vmul.f32 %v251, 1.442695
        %v255 = vpow.pop %v254
        %v256 = vadd.f32 %v253, 0.0
        %v257 = vadd.f32 %v255, 0.0
        %vm258 = vcmp.eq.s32.totalorder %v231, 0
        %vm259 = vcmp.eq.s32.totalorder %v232, 0
        %v260 = vsel %vm258, %v233, 0.0
        %v261 = vsel %vm259, %v234, 0.0
        %v262 = vadd.f32 %v260, 0.0
        %v263 = vadd.f32 %v261, 0.0
        %v264 = vsub.f32 %v236, %v248
        %v265 = vsub.f32 %v237, %v249
        %v266 = vmul.f32 %v264, 1.442695
        %v267 = vpow.pop %v266
        %v268 = vmul.f32 %v265, 1.442695
        %v269 = vpow.pop %v268
        %v270 = vadd.f32 %v256, %v267
        %v271 = vadd.f32 %v257, %v269
        %vm272 = vcmp.eq.s32.totalorder %v231, 1
        %vm273 = vcmp.eq.s32.totalorder %v232, 1
        %v274 = vsel %vm272, %v236, 0.0
        %v275 = vsel %vm273, %v237, 0.0
        %v276 = vadd.f32 %v262, %v274
        %v277 = vadd.f32 %v263, %v275
        %v278 = vsub.f32 %v241, %v248
        %v279 = vsub.f32 %v242, %v249
        %v280 = vmul.f32 %v278, 1.442695
        %v281 = vpow.pop %v280
        %v282 = vmul.f32 %v279, 1.442695
        %v283 = vpow.pop %v282
        %v284 = vadd.f32 %v270, %v281
        %v285 = vadd.f32 %v271, %v283
        %vm286 = vcmp.eq.s32.totalorder %v231, 2
        %vm287 = vcmp.eq.s32.totalorder %v232, 2
        %v288 = vsel %vm286, %v241, 0.0
        %v289 = vsel %vm287, %v242, 0.0
        %v290 = vadd.f32 %v276, %v288
        %v291 = vadd.f32 %v277, %v289
        %v292 = vsub.f32 %v246, %v248
        %v293 = vsub.f32 %v247, %v249
        %v294 = vmul.f32 %v292, 1.442695
        %v295 = vpow.pop %v294
        %v296 = vmul.f32 %v293, 1.442695
        %v297 = vpow.pop %v296
        %v298 = vadd.f32 %v284, %v295
        %v299 = vadd.f32 %v285, %v297
        %vm300 = vcmp.eq.s32.totalorder %v231, 3
        %vm301 = vcmp.eq.s32.totalorder %v232, 3
        %v302 = vsel %vm300, %v246, 0.0
        %v303 = vsel %vm301, %v247, 0.0
        %v304 = vadd.f32 %v290, %v302
        %v305 = vadd.f32 %v291, %v303
        %v306 = vlog2.pop %v298
        %v307 = vmul.f32 %v306, 0.6931472
        %v308 = vlog2.pop %v299
        %v309 = vmul.f32 %v308, 0.6931472
        %v310 = vadd.f32 %v307, %v248
        %v311 = vadd.f32 %v309, %v249
        %vm312 = vcmp.ne.s32.totalorder %v231, 255
        %vm313 = vcmp.ne.s32.totalorder %v232, 255
        %v314 = vsub.f32 %v310, %v304
        %v315 = vsub.f32 %v311, %v305
        %v316 = vsel %vm312, %v314, 0.0
        %v317 = vsel %vm313, %v315, 0.0
        %vm318 = vcmask 130048
        %319 = vst.msk [vmem:[%s227] sm:$0xff] %vm318, %v316
        %320 = vst.msk [vmem:[%s227 + $0x8] sm:$0xff] %vm318, %v317
        %s321 = sand.u32 %s100, 1
        %s322 = scalar_lea.sflag [#allocation4], %s321
        %s323 = sand.u32 %s100, 1
        %s324 = smul.addr %s323, 16
        %s325 = scalar_lea.vmem [#allocation7], %s324
        // Predicated region
        $region37: #{tpu_custom_call.1} parent=27 // pred_check
          %p326 = pneg %p110
        $region38: #{tpu_custom_call.1} parent=27 // pred_check_branch
          %328 = sbr.rel (%p326) target = $region40
        $region39: #{tpu_custom_call.1} parent=27 // pred_region
          %s329 = smul.u32 2, %s27
          %331 = vsyncadd %s322, 0
          %s332 = smul.addr %s26, 2
          %s333 = sadd.s32 %s329, %s332
          %s334 = smul.addr %s333, 8
          %s335 = scalar_lea.hbm %s2, %s334
          %s336 = sshll.u32 %s325, 4
          %s337 = int_to_ptr.vmem [resolvable:$true] %s336
          %s338 = sshll.u32 %s335, 4
          %s339 = int_to_ptr.hbm [resolvable:$true] %s338
          %344 = dma.vmem_to_hbm [thread:$0]  %s337, 256, %s339, %s322, 128, 128, 8
        $region40: #{tpu_custom_call.1} parent=27 // pred_fallthru
          _
      $region28: #{tpu_custom_call.1} parent=5 // pred_fallthru
        _
      %p345 = scmp.le.s32.totalorder 2, %s17
      // Predicated region
      $region41: #{tpu_custom_call.1} parent=5 // pred_check
        %p346 = pneg %p345
      $region42: #{tpu_custom_call.1} parent=5 // pred_check_branch
        %348 = sbr.rel (%p346) target = $region44
      $region43: #{tpu_custom_call.1} parent=5 // pred_region
        %s349 = ssub.s32 %s17, 2
        // Predicated region
        $region45: #{tpu_custom_call.1} parent=43 // pred_check
          %p350 = pneg %p116
        $region46: #{tpu_custom_call.1} parent=43 // pred_check_branch
          %352 = sbr.rel (%p350) target = $region48
        $region47: #{tpu_custom_call.1} parent=43 // pred_region
          %s353 = sand.u32 %s101, 1
          %s354 = scalar_lea.sflag [#allocation4], %s353
          %s355 = sand.u32 %s101, 1
          %s356 = smul.addr %s355, 16
          %s357 = scalar_lea.vmem [#allocation7], %s356
          %359 = dma.done %s354, 256
        $region48: #{tpu_custom_call.1} parent=43 // pred_fallthru
          _
      $region44: #{tpu_custom_call.1} parent=5 // pred_fallthru
        _
    $region6: #{tpu_custom_call.1} parent=1 // loop_footer
      %s21 = sadd.s32 1, %s17
    $region7: #{tpu_custom_call.1} parent=1 // loop_footer_branch
      %16 = sbr.rel target = $region3
    $region8: #{tpu_custom_call.1} parent=1 // loop_exit
      _
    %360 = vsyncpa [#allocation3], 1
    %s361 = scalar_lea.sflag [#allocation3], 1
    %362 = vsyncpa %s361, 1
    %363 = vsyncpa [#allocation6], 1
    %s364 = scalar_lea.sflag [#allocation6], 1
    %365 = vsyncpa %s364, 1
    %366 = vsyncpa [#allocation4], 1
    %s367 = scalar_lea.sflag [#allocation4], 1
    %368 = vsyncpa %s367, 1

</llo_original>
